<compile_context>
chip_gen: v5e
topology: v5e:2x2
jax: 0.10.0
libtpu: 0.0.40
codegen_flags: <defaults>
</compile_context>

<pallas_src>
import functools

import jax
import jax.numpy as jnp
from jax.experimental import pallas as pl
from jax.experimental.pallas import tpu as pltpu


def _round_up(v, m):
    return ((v + m - 1) // m) * m


def _tdnnf_bn_kernel(p_ref, w_ref, o_ref, sum_sc, ssq_sc, *, inv_n, eps):
    """grid = (2, n_row_tiles).  pass 0: BN stats; pass 1: normalize+ReLU+store."""
    pp = pl.program_id(0)   # 0 = stats pass, 1 = normalize pass
    i = pl.program_id(1)    # row-tile index

    @pl.when((pp == 0) & (i == 0))
    def _init():
        sum_sc[...] = jnp.zeros_like(sum_sc)
        ssq_sc[...] = jnp.zeros_like(ssq_sc)
        # Output block is pinned at (0, 0) for the whole stats pass; give it a
        # defined value so no flush could ever write uninitialized VMEM.
        o_ref[...] = jnp.zeros_like(o_ref)

    # Fused linearB -> identity bottleneck_ld -> linearA -> bypass:
    # one K = ctx*D matmul against the pre-combined weight, bf16 operands,
    # f32 accumulation.  The combined bias is intentionally NOT added: it is a
    # per-channel constant that cancels in (z - mean) * inv_std, and omitting
    # it keeps zero-padded rows at exactly z == 0 so they never perturb stats.
    z = jnp.dot(p_ref[...], w_ref[...], preferred_element_type=jnp.float32)

    @pl.when(pp == 0)
    def _accumulate_stats():
        sum_sc[...] += jnp.sum(z, axis=0, keepdims=True)
        ssq_sc[...] += jnp.sum(z * z, axis=0, keepdims=True)

    @pl.when((pp == 1) & (i == 0))
    def _finalize_stats():
        mean = sum_sc[...] * inv_n
        var = ssq_sc[...] * inv_n - mean * mean
        sum_sc[...] = mean                                  # reused as mean
        ssq_sc[...] = jax.lax.rsqrt(jnp.maximum(var, 0.0) + eps)  # as inv-std

    @pl.when(pp == 1)
    def _normalize_and_store():
        zn = (z - sum_sc[...]) * ssq_sc[...]
        o_ref[...] = jnp.maximum(zn, 0.0).astype(o_ref.dtype)


def tdnnf_batchnorm_ld_forward(x, W_B, b_B, W_A, b_A, *,
                               context_len=1, subsampling_factor=1,
                               bypass_scale=0.66, eps=1e-5,
                               tile_rows=4096, compute_dtype=jnp.bfloat16):
    """x: (mb, T, feat_dim) float32.  Returns (mb, T', output_dim) float32."""
    mb, T, D = x.shape
    out_dim = W_A.shape[0]
    ctx = int(context_len)
    sub = int(subsampling_factor)
    Tp = (T - ctx) // sub + 1
    n_rows = mb * Tp
    K = ctx * D

    use_bypass = (bypass_scale > 0.0) and (D == out_dim)
    lidx = ((1 if ctx == 2 else ctx // 2) if ctx > 1 else 0)

    # ---- wrapper weight algebra ------------------------------------------
    # bottleneck_ld is identity, so linearA(linearB(p)) = p @ (W_A @ W_B)^T + b.
    # The bypass rows are context chunk `lidx` of the unfolded input, so the
    # bypass folds into the combined weight as a scaled identity block.
    # The combined bias b_A + b_B @ W_A^T cancels under training-mode
    # BatchNorm(affine=False) and is not needed for the forward output.
    # TODO(synk): BatchNorm running-mean/var update (training side effect) not
    # modeled; it would need the combined bias and un-normalized batch stats.
    Wc = jnp.dot(W_A.astype(jnp.float32), W_B.astype(jnp.float32))   # (out, K)
    if use_bypass:
        Wc = Wc.at[:, lidx * D:(lidx + 1) * D].add(
            jnp.eye(out_dim, dtype=jnp.float32) * float(bypass_scale))
    wt = jnp.transpose(Wc).astype(compute_dtype)                      # (K, out)

    # ---- wrapper context unfold: one lane-dense (rows, ctx*D) slab --------
    cols = [jax.lax.slice(x, (0, c, 0), (mb, c + sub * (Tp - 1) + 1, D),
                          (1, sub, 1)) for c in range(ctx)]            # (mb,Tp,D)
    p = jnp.concatenate(cols, axis=-1).astype(compute_dtype)           # (mb,Tp,K)
    p = p.reshape(n_rows, K)                                           # free reshape

    # ---- tile geometry -----------------------------------------------------
    r_align = 16     # bf16 sublane packing; also satisfies f32 output (8)
    row_bytes = K * jnp.dtype(compute_dtype).itemsize + out_dim * 4
    budget = 6 * 1024 * 1024                     # per-buffer VMEM target
    tile_rows = int(min(max(tile_rows, r_align), max(r_align, budget // row_bytes)))
    tile_rows = _round_up(tile_rows, r_align)
    if n_rows <= tile_rows:
        R = _round_up(n_rows, r_align)
        n_tiles = 1
    else:
        n_tiles = pl.cdiv(n_rows, tile_rows)
        R = _round_up(pl.cdiv(n_rows, n_tiles), r_align)
        n_tiles = pl.cdiv(n_rows, R)
    rows_pad = n_tiles * R
    if rows_pad != n_rows:
        # Zero rows contribute exactly 0 to the (bias-free) stats; trimmed below.
        p = jnp.pad(p, ((0, rows_pad - n_rows), (0, 0)))

    kernel = functools.partial(_tdnnf_bn_kernel,
                               inv_n=1.0 / float(n_rows), eps=float(eps))

    out = pl.pallas_call(
        kernel,
        grid_spec=pltpu.PrefetchScalarGridSpec(
            num_scalar_prefetch=0,
            grid=(2, n_tiles),                       # (pass, row tiles)
            in_specs=[
                pl.BlockSpec((R, K), lambda pp, i: (i, 0)),        # unfolded x
                pl.BlockSpec((K, out_dim), lambda pp, i: (0, 0)),  # combined W
            ],
            # Pinned at (0,0) during pass 0 (no garbage flush — block also
            # zero-initialized in-kernel); real blocks written in pass 1.
            out_specs=pl.BlockSpec((R, out_dim), lambda pp, i: (pp * i, 0)),
            scratch_shapes=[pltpu.VMEM((1, out_dim), jnp.float32),   # sum / mean
                            pltpu.VMEM((1, out_dim), jnp.float32)],  # ssq / inv_std
        ),
        out_shape=jax.ShapeDtypeStruct((rows_pad, out_dim), jnp.float32),
        compiler_params=pltpu.CompilerParams(
            dimension_semantics=("arbitrary", "arbitrary")),
    )(p, wt)

    if rows_pad != n_rows:
        out = out[:n_rows]
    return out.reshape(mb, Tp, out_dim)


def _reference_forward(x, W_B, b_B, W_A, b_A, *, context_len, subsampling_factor,
                       bypass_scale, eps=1e-5):
    """Pure-JAX f32 reference with the module's training-mode BatchNorm semantics."""
    mb, T, D = x.shape
    ctx, sub = context_len, subsampling_factor
    out_dim = W_A.shape[0]
    Tp = (T - ctx) // sub + 1
    cols = [jax.lax.slice(x, (0, c, 0), (mb, c + sub * (Tp - 1) + 1, D), (1, sub, 1))
            for c in range(ctx)]
    p = jnp.concatenate(cols, axis=-1)                              # (mb, Tp, ctx*D)
    hp = jax.lax.Precision.HIGHEST
    y = jnp.einsum('btf,of->bto', p, W_B, precision=hp) + b_B.reshape(1, 1, -1)
    z = jnp.einsum('btf,of->bto', y, W_A, precision=hp) + b_A.reshape(1, 1, -1)
    if bypass_scale > 0.0 and D == out_dim:
        lidx = (1 if ctx == 2 else ctx // 2) if ctx > 1 else 0
        z = z + cols[lidx] * bypass_scale
    zf = z.reshape(mb * Tp, out_dim)
    mean = zf.mean(axis=0)
    var = zf.var(axis=0)                                            # biased
    zn = (z - mean) / jnp.sqrt(var + eps)
    return jnp.maximum(zn, 0.0)


if __name__ == "__main__":
    # Small, module-consistent shapes.
    mb, T = 2, 18
    feat_dim, output_dim, bottleneck_dim = 32, 32, 16
    context_len, subsampling_factor = 3, 1
    bypass_scale = 0.66                  # feat_dim == output_dim -> bypass active

    key = jax.random.PRNGKey(0)
    k1, k2, k3, k4, k5 = jax.random.split(key, 5)

    x = jax.random.normal(k1, (mb, T, feat_dim), dtype=jnp.float32)

    # Parameter init matching the module's shapes.
    Din = feat_dim * context_len
    W_B = (jax.random.normal(k2, (bottleneck_dim, Din), dtype=jnp.float32)
           * (1.0 / (Din * bottleneck_dim) ** 0.5))
    b_B = jax.random.normal(k3, (1, bottleneck_dim), dtype=jnp.float32)
    bound = 1.0 / (bottleneck_dim ** 0.5)
    W_A = jax.random.uniform(k4, (output_dim, bottleneck_dim),
                             minval=-bound, maxval=bound, dtype=jnp.float32)
    b_A = jax.random.uniform(k5, (1, output_dim),
                             minval=-bound, maxval=bound, dtype=jnp.float32)

    fwd = jax.jit(functools.partial(
        tdnnf_batchnorm_ld_forward,
        context_len=context_len,
        subsampling_factor=subsampling_factor,
        bypass_scale=bypass_scale))

    out = fwd(x, W_B, b_B, W_A, b_A)
    jax.block_until_ready(out)
    Tp = (T - context_len) // subsampling_factor + 1
    assert out.shape == (mb, Tp, output_dim)

    ref = _reference_forward(x, W_B, b_B, W_A, b_A,
                             context_len=context_len,
                             subsampling_factor=subsampling_factor,
                             bypass_scale=bypass_scale)
    # Tolerance reflects bf16 MXU operands (kernel) vs f32-HIGHEST reference.
    err = float(jnp.max(jnp.abs(out - ref)))
    assert err < 3e-2, f"max abs error {err}"
    print("KERNEL_OK")
</pallas_src>

<mosaic_0001>
module attributes {stable_mosaic.version = 11 : i64} {
  func.func @_tdnnf_bn_kernel(%arg0: i32, %arg1: i32, %arg2: memref<32x96xbf16, #tpu.memory_space<vmem>>, %arg3: memref<96x32xbf16, #tpu.memory_space<vmem>>, %arg4: memref<32x32xf32, #tpu.memory_space<vmem>>, %arg5: memref<1x32xf32, #tpu.memory_space<vmem>>, %arg6: memref<1x32xf32, #tpu.memory_space<vmem>>) attributes {dimension_semantics = [#tpu.dimension_semantics<arbitrary>, #tpu.dimension_semantics<arbitrary>], iteration_bounds = array<i64: 2, 1>, scalar_prefetch = 0 : i64, scratch_operands = 2 : i64, tpu.core_type = #tpu.core_type<tc>, window_params = [{transform_indices = @transform_0, window_bounds = array<i64: 32, 96>}, {pipeline_mode = #tpu.pipeline_mode<synchronous>, transform_indices = @transform_1, window_bounds = array<i64: 96, 32>}, {transform_indices = @transform_2, window_bounds = array<i64: 32, 32>}]} {
    %c0_i32 = arith.constant 0 : i32
    %0 = arith.cmpi eq, %arg0, %c0_i32 : i32
    %c0_i32_0 = arith.constant 0 : i32
    %1 = arith.cmpi eq, %arg1, %c0_i32_0 : i32
    %2 = arith.andi %0, %1 : i1
    %3 = arith.extui %2 : i1 to i32
    %c0_i32_1 = arith.constant 0 : i32
    %4 = arith.cmpi ne, %3, %c0_i32_1 : i32
    scf.if %4 {
      %cst_11 = arith.constant 0.000000e+00 : f32
      %19 = vector.broadcast %cst_11 : f32 to vector<1x32xf32>
      %c0_12 = arith.constant 0 : index
      %c0_13 = arith.constant 0 : index
      %20 = vector.load %arg5[%c0_12, %c0_13] : memref<1x32xf32, #tpu.memory_space<vmem>>, vector<1x32xf32>
      tpu.vector_store %arg5[%c0_12, %c0_13], %19 {strides = array<i32>} : memref<1x32xf32, #tpu.memory_space<vmem>>, vector<1x32xf32>,
      %cst_14 = arith.constant 0.000000e+00 : f32
      %21 = vector.broadcast %cst_14 : f32 to vector<1x32xf32>
      %c0_15 = arith.constant 0 : index
      %c0_16 = arith.constant 0 : index
      %22 = vector.load %arg6[%c0_15, %c0_16] : memref<1x32xf32, #tpu.memory_space<vmem>>, vector<1x32xf32>
      tpu.vector_store %arg6[%c0_15, %c0_16], %21 {strides = array<i32>} : memref<1x32xf32, #tpu.memory_space<vmem>>, vector<1x32xf32>,
      %cst_17 = arith.constant 0.000000e+00 : f32
      %23 = vector.broadcast %cst_17 : f32 to vector<32x32xf32>
      %c0_18 = arith.constant 0 : index
      %c0_19 = arith.constant 0 : index
      %24 = vector.load %arg4[%c0_18, %c0_19] : memref<32x32xf32, #tpu.memory_space<vmem>>, vector<32x32xf32>
      tpu.vector_store %arg4[%c0_18, %c0_19], %23 {strides = array<i32>} : memref<32x32xf32, #tpu.memory_space<vmem>>, vector<32x32xf32>,
    } else {
    }
    %c0 = arith.constant 0 : index
    %c0_2 = arith.constant 0 : index
    %5 = vector.load %arg2[%c0, %c0_2] : memref<32x96xbf16, #tpu.memory_space<vmem>>, vector<32x96xbf16>
    %c0_3 = arith.constant 0 : index
    %c0_4 = arith.constant 0 : index
    %6 = vector.load %arg3[%c0_3, %c0_4] : memref<96x32xbf16, #tpu.memory_space<vmem>>, vector<96x32xbf16>
    %cst = arith.constant dense<0.000000e+00> : vector<32x32xf32>
    %7 = tpu.matmul %5, %6, %cst {dimension_numbers = #tpu.dot_dimension_numbers<[1], [0], [0], [1], [0, 0, 1, 1], [], []>} : vector<32x96xbf16>, vector<96x32xbf16>, vector<32x32xf32> -> vector<32x32xf32>
    %c0_i32_5 = arith.constant 0 : i32
    %8 = arith.cmpi eq, %arg0, %c0_i32_5 : i32
    %9 = arith.extui %8 : i1 to i32
    %c0_i32_6 = arith.constant 0 : i32
    %10 = arith.cmpi ne, %9, %c0_i32_6 : i32
    scf.if %10 {
      %c0_11 = arith.constant 0 : index
      %c0_12 = arith.constant 0 : index
      %19 = vector.load %arg5[%c0_11, %c0_12] : memref<1x32xf32, #tpu.memory_space<vmem>>, vector<1x32xf32>
      %cst_13 = arith.constant dense<0.000000e+00> : vector<32xf32>
      %20 = vector.multi_reduction <add>, %7, %cst_13 [0] : vector<32x32xf32> to vector<32xf32>
      %21 = vector.shape_cast %20 : vector<32xf32> to vector<1x32xf32>
      %22 = arith.addf %19, %21 : vector<1x32xf32>
      %c0_14 = arith.constant 0 : index
      %c0_15 = arith.constant 0 : index
      %23 = vector.load %arg5[%c0_14, %c0_15] : memref<1x32xf32, #tpu.memory_space<vmem>>, vector<1x32xf32>
      tpu.vector_store %arg5[%c0_14, %c0_15], %22 {strides = array<i32>} : memref<1x32xf32, #tpu.memory_space<vmem>>, vector<1x32xf32>,
      %c0_16 = arith.constant 0 : index
      %c0_17 = arith.constant 0 : index
      %24 = vector.load %arg6[%c0_16, %c0_17] : memref<1x32xf32, #tpu.memory_space<vmem>>, vector<1x32xf32>
      %25 = arith.mulf %7, %7 : vector<32x32xf32>
      %cst_18 = arith.constant dense<0.000000e+00> : vector<32xf32>
      %26 = vector.multi_reduction <add>, %25, %cst_18 [0] : vector<32x32xf32> to vector<32xf32>
      %27 = vector.shape_cast %26 : vector<32xf32> to vector<1x32xf32>
      %28 = arith.addf %24, %27 : vector<1x32xf32>
      %c0_19 = arith.constant 0 : index
      %c0_20 = arith.constant 0 : index
      %29 = vector.load %arg6[%c0_19, %c0_20] : memref<1x32xf32, #tpu.memory_space<vmem>>, vector<1x32xf32>
      tpu.vector_store %arg6[%c0_19, %c0_20], %28 {strides = array<i32>} : memref<1x32xf32, #tpu.memory_space<vmem>>, vector<1x32xf32>,
    } else {
    }
    %c1_i32 = arith.constant 1 : i32
    %11 = arith.cmpi eq, %arg0, %c1_i32 : i32
    %c0_i32_7 = arith.constant 0 : i32
    %12 = arith.cmpi eq, %arg1, %c0_i32_7 : i32
    %13 = arith.andi %11, %12 : i1
    %14 = arith.extui %13 : i1 to i32
    %c0_i32_8 = arith.constant 0 : i32
    %15 = arith.cmpi ne, %14, %c0_i32_8 : i32
    scf.if %15 {
      %c0_11 = arith.constant 0 : index
      %c0_12 = arith.constant 0 : index
      %19 = vector.load %arg5[%c0_11, %c0_12] : memref<1x32xf32, #tpu.memory_space<vmem>>, vector<1x32xf32>
      %cst_13 = arith.constant 3.125000e-02 : f32
      %20 = vector.broadcast %cst_13 : f32 to vector<1x32xf32>
      %21 = arith.mulf %19, %20 : vector<1x32xf32>
      %c0_14 = arith.constant 0 : index
      %c0_15 = arith.constant 0 : index
      %22 = vector.load %arg6[%c0_14, %c0_15] : memref<1x32xf32, #tpu.memory_space<vmem>>, vector<1x32xf32>
      %cst_16 = arith.constant 3.125000e-02 : f32
      %23 = vector.broadcast %cst_16 : f32 to vector<1x32xf32>
      %24 = arith.mulf %22, %23 : vector<1x32xf32>
      %25 = arith.mulf %21, %21 : vector<1x32xf32>
      %26 = arith.subf %24, %25 : vector<1x32xf32>
      %c0_17 = arith.constant 0 : index
      %c0_18 = arith.constant 0 : index
      %27 = vector.load %arg5[%c0_17, %c0_18] : memref<1x32xf32, #tpu.memory_space<vmem>>, vector<1x32xf32>
      tpu.vector_store %arg5[%c0_17, %c0_18], %21 {strides = array<i32>} : memref<1x32xf32, #tpu.memory_space<vmem>>, vector<1x32xf32>,
      %cst_19 = arith.constant 0.000000e+00 : f32
      %28 = vector.broadcast %cst_19 : f32 to vector<1x32xf32>
      %29 = arith.maximumf %26, %28 : vector<1x32xf32>
      %cst_20 = arith.constant 9.99999974E-6 : f32
      %30 = vector.broadcast %cst_20 : f32 to vector<1x32xf32>
      %31 = arith.addf %29, %30 : vector<1x32xf32>
      %32 = math.rsqrt %31 : vector<1x32xf32>
      %c0_21 = arith.constant 0 : index
      %c0_22 = arith.constant 0 : index
      %33 = vector.load %arg6[%c0_21, %c0_22] : memref<1x32xf32, #tpu.memory_space<vmem>>, vector<1x32xf32>
      tpu.vector_store %arg6[%c0_21, %c0_22], %32 {strides = array<i32>} : memref<1x32xf32, #tpu.memory_space<vmem>>, vector<1x32xf32>,
    } else {
    }
    %c1_i32_9 = arith.constant 1 : i32
    %16 = arith.cmpi eq, %arg0, %c1_i32_9 : i32
    %17 = arith.extui %16 : i1 to i32
    %c0_i32_10 = arith.constant 0 : i32
    %18 = arith.cmpi ne, %17, %c0_i32_10 : i32
    scf.if %18 {
      %c0_11 = arith.constant 0 : index
      %c0_12 = arith.constant 0 : index
      %19 = vector.load %arg5[%c0_11, %c0_12] : memref<1x32xf32, #tpu.memory_space<vmem>>, vector<1x32xf32>
      %20 = vector.broadcast %19 : vector<1x32xf32> to vector<32x32xf32>
      %21 = arith.subf %7, %20 : vector<32x32xf32>
      %c0_13 = arith.constant 0 : index
      %c0_14 = arith.constant 0 : index
      %22 = vector.load %arg6[%c0_13, %c0_14] : memref<1x32xf32, #tpu.memory_space<vmem>>, vector<1x32xf32>
      %23 = vector.broadcast %22 : vector<1x32xf32> to vector<32x32xf32>
      %24 = arith.mulf %21, %23 : vector<32x32xf32>
      %cst_15 = arith.constant 0.000000e+00 : f32
      %25 = vector.broadcast %cst_15 : f32 to vector<32x32xf32>
      %26 = arith.maximumf %24, %25 : vector<32x32xf32>
      %c0_16 = arith.constant 0 : index
      %c0_17 = arith.constant 0 : index
      %27 = vector.load %arg4[%c0_16, %c0_17] : memref<32x32xf32, #tpu.memory_space<vmem>>, vector<32x32xf32>
      tpu.vector_store %arg4[%c0_16, %c0_17], %26 {strides = array<i32>} : memref<32x32xf32, #tpu.memory_space<vmem>>, vector<32x32xf32>,
    } else {
    }
    return
  }
  func.func @transform_0(%arg0: i32, %arg1: i32) -> (i32, i32) {
    %c0_i32 = arith.constant 0 : i32
    %c0_i32_0 = arith.constant 0 : i32
    return %arg1, %c0_i32 : i32, i32
  }
  func.func @transform_1(%arg0: i32, %arg1: i32) -> (i32, i32) {
    %c0_i32 = arith.constant 0 : i32
    %c0_i32_0 = arith.constant 0 : i32
    %c0_i32_1 = arith.constant 0 : i32
    return %c0_i32, %c0_i32_0 : i32, i32
  }
  func.func @transform_2(%arg0: i32, %arg1: i32) -> (i32, i32) {
    %0 = arith.muli %arg0, %arg1 : i32
    %c0_i32 = arith.constant 0 : i32
    %c0_i32_0 = arith.constant 0 : i32
    return %0, %c0_i32 : i32, i32
  }
}

</mosaic_0001>

<llo_original>
// kernel: tdnnf_batchnorm_ld_forward.1
$region0: #{tdnnf_batchnorm_ld_forward.1}
  #allocation0 [shape = 'u32[]', space=smem, size = 0x4, offset = 0x4, fixed_abs, tag = 'smem constant byte address 0x4 - core index']
  #allocation1 [shape = 'u32[72,128]{1,0:T(1,128)}', space=vmem, size = 0x9000, scoped, tag = 'internal scratch']
  #allocation2 [shape = 'f32[1,32]{1,0:T(1,128)}', space=vmem, size = 0x200, scoped, tag = 'scratch operand']
  #allocation3 [shape = 'f32[1,32]{1,0:T(1,128)}', space=vmem, size = 0x200, scoped, tag = 'scratch operand']
  %s0 = inlined_call_operand.vmem [shape: bf16[32,96], index: 0, kind: input, shape index: {}]
  %s1 = inlined_call_operand.vmem [shape: bf16[96,32], index: 1, kind: input, shape index: {}]
  %s2 = inlined_call_operand.hbm [shape: f32[32,32], index: 2, kind: output, shape index: {}]
  %s3 = sld [smem:[#allocation0]]
  $region57: #{tdnnf_batchnorm_ld_forward.1} parent=0
    _
  %s5 = ssub.s32 1, %s3
  %s6 = scalar_select 0, %s5, %s3
  $region1: #{tdnnf_batchnorm_ld_forward.1} parent=0
    #allocation4 [shape = 'u8[32768]{0}', space=vmem, size = 0x8000, scoped, tag = 'output window, operand 0']
    #allocation5 [shape = 's32[2]{0}', space=sflag, size = 0x8, scoped, tag = 'scoped memory for tdnnf_batchnorm_ld_forward.1']
    %7 = vsyncpa [#allocation5], 0
    %s8 = scalar_lea.sflag [#allocation5], 1
    %9 = vsyncpa %s8, 0
    loop: start=0, step=1, limit=4
    $region2: #{tdnnf_batchnorm_ld_forward.1} parent=1 // loop_pre_header
      _
    $region3: #{tdnnf_batchnorm_ld_forward.1} parent=1 // loop_header
      %s11 = sphi 0, %s15
      %p12 = scmp.ge.s32.totalorder %s11, 4
      %s18 = sphi 0, %s30
      %s19 = sphi 0, %s26
      %s20 = sphi 0, %s18
      %s21 = sphi 0, %s19
      %s22 = sphi 0, %s20
      %s23 = sphi 0, %s21
      %s33 = sphi 0, %s35
      %s36 = sphi 0, %s33
      %s37 = sphi 0, %s36
      %s53 = sphi 0, %s37
      %s57 = sphi 0, %s57
      %s59 = sphi 0, %s57
      %s60 = sphi 0, %s59
      %s74 = sphi 0, %s60
      %s82 = sphi 0, %s84
      %s85 = sphi 0, %s82
      %s86 = sphi 0, %s85
      %s102 = sphi 0, %s86
    $region4: #{tdnnf_batchnorm_ld_forward.1} parent=1 // loop_header_branch
      %14 = sbr.rel (%p12) target = $region8
    $region5: #{tdnnf_batchnorm_ld_forward.1} parent=1 // loop_body
      %s16 = ssub.s32 %s11, 1
      %s17 = ssub.s32 %s11, 2
      %s24 = sadd.s32 1, %s19
      %p25 = scmp.ge.s32.totalorder %s24, 1
      %s26 = scalar_select %p25, 0, %s24
      %s27 = sadd.s32 1, %s18
      %s28 = scalar_select %p25, %s27, %s18
      %p29 = scmp.ge.s32.totalorder %s28, 2
      %s30 = scalar_select %p29, 0, %s28
      %s31 = ssub.s32 %s19, %s26
      %p32 = scmp.eq.s32.totalorder %s31, 0
      %s34 = sadd.s32 %s33, 1
      %s35 = scalar_select %p32, %s33, %s34
      %p38 = pneg %p32
      %p39 = scmp.eq.s32.totalorder %s11, 1
      %p40 = por %p38, %p39
      %p41 = scmp.ne.s32.totalorder %s33, %s36
      %p42 = scmp.eq.s32.totalorder %s11, 0
      %p43 = por %p41, %p42
      %p44 = scmp.ne.s32.totalorder %s33, %s36
      %p45 = scmp.eq.s32.totalorder %s16, 1
      %p46 = por %p44, %p45
      %p47 = scmp.ne.s32.totalorder %s36, %s37
      %p48 = scmp.eq.s32.totalorder %s16, 0
      %p49 = por %p47, %p48
      %p50 = scmp.ne.s32.totalorder %s36, %s37
      %p51 = scmp.eq.s32.totalorder %s17, 1
      %p52 = por %p50, %p51
      %p54 = scmp.ne.s32.totalorder %s37, %s53
      %p55 = scmp.eq.s32.totalorder %s17, 0
      %p56 = por %p54, %p55
      %s58 = sadd.s32 %s57, 1
      %p61 = scmp.eq.s32.totalorder %s11, 1
      %p62 = scmp.ne.s32.totalorder %s57, %s59
      %p63 = scmp.eq.s32.totalorder %s11, 0
      %p64 = por %p62, %p63
      %p65 = scmp.ne.s32.totalorder %s57, %s59
      %p66 = scmp.eq.s32.totalorder %s16, 1
      %p67 = por %p65, %p66
      %p68 = scmp.ne.s32.totalorder %s59, %s60
      %p69 = scmp.eq.s32.totalorder %s16, 0
      %p70 = por %p68, %p69
      %p71 = scmp.ne.s32.totalorder %s59, %s60
      %p72 = scmp.eq.s32.totalorder %s17, 1
      %p73 = por %p71, %p72
      %p75 = scmp.ne.s32.totalorder %s60, %s74
      %p76 = scmp.eq.s32.totalorder %s17, 0
      %p77 = por %p75, %p76
      %s78 = smul.u32 %s18, %s19
      %s79 = smul.u32 %s30, %s26
      %s80 = ssub.s32 %s78, %s79
      %p81 = scmp.eq.s32.totalorder %s80, 0
      %s83 = sadd.s32 %s82, 1
      %s84 = scalar_select %p81, %s82, %s83
      %p87 = pneg %p81
      %p88 = scmp.eq.s32.totalorder %s11, 1
      %p89 = por %p87, %p88
      %p90 = scmp.ne.s32.totalorder %s82, %s85
      %p91 = scmp.eq.s32.totalorder %s11, 0
      %p92 = por %p90, %p91
      %p93 = scmp.ne.s32.totalorder %s82, %s85
      %p94 = scmp.eq.s32.totalorder %s16, 1
      %p95 = por %p93, %p94
      %p96 = scmp.ne.s32.totalorder %s85, %s86
      %p97 = scmp.eq.s32.totalorder %s16, 0
      %p98 = por %p96, %p97
      %p99 = scmp.ne.s32.totalorder %s85, %s86
      %p100 = scmp.eq.s32.totalorder %s17, 1
      %p101 = por %p99, %p100
      %p103 = scmp.ne.s32.totalorder %s86, %s102
      %p104 = scmp.eq.s32.totalorder %s17, 0
      %p105 = por %p103, %p104
      %p106 = scmp.le.s32.totalorder 1, %s11
      %p107 = scmp.lt.s32.totalorder %s11, 3
      %p108 = pnand %p106, %p107
      %p109 = pneg %p108
      // Predicated region
      $region9: #{tdnnf_batchnorm_ld_forward.1} parent=5 // pred_check
        _
      $region10: #{tdnnf_batchnorm_ld_forward.1} parent=5 // pred_check_branch
        %111 = sbr.rel (%p108) target = $region12
      $region11: #{tdnnf_batchnorm_ld_forward.1} parent=5 // pred_region
        %s112 = ssub.s32 %s11, 1
        // Predicated region
        $region13: #{tdnnf_batchnorm_ld_forward.1} parent=11 // pred_check
          %p113 = pneg %p49
        $region14: #{tdnnf_batchnorm_ld_forward.1} parent=11 // pred_check_branch
          %115 = sbr.rel (%p113) target = $region16
        $region15: #{tdnnf_batchnorm_ld_forward.1} parent=11 // pred_region
          %s116 = smul.u32 4, %s21
          %p117 = scmp.lt.s32.totalorder %s116, 3
          %s118 = scalar_select %p117, %s116, 3
          %s119 = smul.addr %s118, 4
          %s120 = scalar_lea.vmem %s0, %s119
          %s121 = smul.u32 4, %s21
        $region16: #{tdnnf_batchnorm_ld_forward.1} parent=11 // pred_fallthru
          _
        // Predicated region
        $region17: #{tdnnf_batchnorm_ld_forward.1} parent=11 // pred_check
          %p122 = pneg %p70
        $region18: #{tdnnf_batchnorm_ld_forward.1} parent=11 // pred_check_branch
          %124 = sbr.rel (%p122) target = $region20
        $region19: #{tdnnf_batchnorm_ld_forward.1} parent=11 // pred_region
          _
        $region20: #{tdnnf_batchnorm_ld_forward.1} parent=11 // pred_fallthru
          _
      $region12: #{tdnnf_batchnorm_ld_forward.1} parent=5 // pred_fallthru
        _
      %p125 = scmp.lt.s32.totalorder %s11, 2
      // Predicated region
      $region21: #{tdnnf_batchnorm_ld_forward.1} parent=5 // pred_check
        %p126 = pneg %p125
      $region22: #{tdnnf_batchnorm_ld_forward.1} parent=5 // pred_check_branch
        %128 = sbr.rel (%p126) target = $region24
      $region23: #{tdnnf_batchnorm_ld_forward.1} parent=5 // pred_region
        _
      $region24: #{tdnnf_batchnorm_ld_forward.1} parent=5 // pred_fallthru
        _
      %p129 = scmp.le.s32.totalorder 1, %s11
      %p130 = scmp.lt.s32.totalorder %s11, 3
      %p131 = pnand %p129, %p130
      %p132 = pneg %p131
      // Predicated region
      $region25: #{tdnnf_batchnorm_ld_forward.1} parent=5 // pred_check
        _
      $region26: #{tdnnf_batchnorm_ld_forward.1} parent=5 // pred_check_branch
        %134 = sbr.rel (%p131) target = $region28
      $region27: #{tdnnf_batchnorm_ld_forward.1} parent=5 // pred_region
        %s135 = ssub.s32 %s11, 1
        %s136 = smul.u32 4, %s21
        %p137 = scmp.lt.s32.totalorder %s136, 3
        %s138 = scalar_select %p137, %s136, 3
        %s139 = smul.addr %s138, 4
        %s140 = scalar_lea.vmem %s0, %s139
        %p141 = pneg %p49
        %p142 = pneg %p46
        %p143 = pneg %p70
        %p144 = pneg %p67
        %p145 = pneg %p98
        %p146 = pneg %p95
        %s147 = sand.u32 %s85, 1
        %s148 = scalar_lea.sflag [#allocation5], %s147
        %s149 = sand.u32 %s85, 1
        %s150 = smul.addr %s149, 32
        %s151 = scalar_lea.vmem [#allocation4], %s150
        %s152 = smul.u32 4, %s21
        %p153 = scmp.lt.s32.totalorder %s152, 3
        %s154 = scalar_select %p153, %s152, 3
        %s155 = smul.addr %s154, 4
        %s156 = scalar_lea.vmem %s0, %s155
        %s157 = smul.u32 4, %s21
        %s158 = smul.u32 %s20, %s21
        %s159 = smul.u32 4, %s158
        %p161 = scmp.eq.s32.totalorder %s20, 0
        %p162 = scmp.eq.s32.totalorder %s21, 0
        %p163 = pnand %p161, %p162
        %p164 = pneg %p163
        // Predicated region
        $region29: #{tdnnf_batchnorm_ld_forward.1} parent=27 // pred_check
          _
        $region30: #{tdnnf_batchnorm_ld_forward.1} parent=27 // pred_check_branch
          %166 = sbr.rel (%p163) target = $region32
        $region31: #{tdnnf_batchnorm_ld_forward.1} parent=27 // pred_region
          %vm167 = vcmask 253952
          %168 = vst.msk [vmem:[#allocation2] sm:$0x1] %vm167, 0.0
          %169 = vst.msk [vmem:[#allocation3] sm:$0x1] %vm167, 0.0
          %vm170 = vcmask 261120
          %171 = vst.msk [vmem:[%s151] sm:$0xff] %vm170, 0.0
          %172 = vst.msk [vmem:[%s151 + $0x8] sm:$0xff] %vm170, 0.0
          %173 = vst.msk [vmem:[%s151 + $0x10] sm:$0xff] %vm170, 0.0
          %174 = vst.msk [vmem:[%s151 + $0x18] sm:$0xff] %vm170, 0.0
        $region32: #{tdnnf_batchnorm_ld_forward.1} parent=27 // pred_fallthru
          _
        %v175 = vld [vmem:[%s156] sm:$0xf]
        %v176 = vld [vmem:[%s156 + $0x4] sm:$0xf]
        %v177 = vld [vmem:[%s156 + $0x8] sm:$0xf]
        %v178 = vld [vmem:[%s156 + $0xc] sm:$0xf]
        %v179 = vld [vmem:[%s1] sm:$0xf]
        %v180 = vld [vmem:[%s1 + $0x4] sm:$0xf]
        %v181 = vld [vmem:[%s1 + $0x8] sm:$0xf]
        %v182 = vld [vmem:[%s1 + $0xc] sm:$0xf]
        %v183 = vld [vmem:[%s1 + $0x10] sm:$0xf]
        %v184 = vld [vmem:[%s1 + $0x14] sm:$0xf]
        %v185 = vld [vmem:[%s1 + $0x18] sm:$0xf]
        %v186 = vld [vmem:[%s1 + $0x1c] sm:$0xf]
        %v187 = vld [vmem:[%s1 + $0x20] sm:$0xf]
        %v188 = vld [vmem:[%s1 + $0x24] sm:$0xf]
        %v189 = vld [vmem:[%s1 + $0x28] sm:$0xf]
        %v190 = vld [vmem:[%s1 + $0x2c] sm:$0xf]
        %v195 = vunpack.c.l.b16 %v175
        %v196 = vunpack.c.l.b16 %v176
        %v197 = vunpack.c.l.b16 %v177
        %v198 = vunpack.c.l.b16 %v178
        %v199 = vpack.c.b16 %v196, %v195
        %v200 = vpack.c.b16 %v198, %v197
        %v213 = vunpack.c.l.b16 %v179
        %v214 = vunpack.c.l.b16 %v180
        %v215 = vunpack.c.l.b16 %v181
        %v216 = vunpack.c.l.b16 %v182
        %v217 = vunpack.c.l.b16 %v183
        %v218 = vunpack.c.l.b16 %v184
        %v219 = vunpack.c.l.b16 %v185
        %v220 = vunpack.c.l.b16 %v186
        %v221 = vunpack.c.l.b16 %v187
        %v222 = vunpack.c.l.b16 %v188
        %v223 = vunpack.c.l.b16 %v189
        %v224 = vunpack.c.l.b16 %v190
        %v225 = vpack.c.b16 %v214, %v213
        %v226 = vpack.c.b16 %v216, %v215
        %v227 = vpack.c.b16 %v218, %v217
        %v228 = vpack.c.b16 %v220, %v219
        %v229 = vpack.c.b16 %v222, %v221
        %v230 = vpack.c.b16 %v224, %v223
        %vm237 = vcmask 785408
        %v239 = vsel %vm237, %v199, 0
        %v242 = vsel %vm237, %v200, 0
        %244 = vmatpush.bf16.msra.mxu0 0
        %245 = vmatpush.bf16.msra.mxu0 0
        %246 = vmatpush.bf16.msra.mxu0 %v230
        %247 = vmatpush.bf16.msra.mxu0 %v229
        %248 = vmatpush.bf16.msra.mxu0 %v228
        %249 = vmatpush.bf16.msra.mxu0 %v227
        %250 = vmatpush.bf16.msra.mxu0 %v226
        %251 = vmatpush.bf16.msra.mxu0 %v225
        %252 = vmatmul.bf16.gmra.mxu0 %v239
        %v253 = vpop.f32.mrf.mxu0
        %v254 = vadd.f32 0.0, %v253
        %v255 = vpop.f32.mrf.mxu0
        %v256 = vadd.f32 0.0, %v255
        %257 = vmatmul.bf16.gmra.mxu0 %v242
        %v258 = vpop.f32.mrf.mxu0
        %v259 = vadd.f32 0.0, %v258
        %v260 = vpop.f32.mrf.mxu0
        %v261 = vadd.f32 0.0, %v260
        %262 = vdwg.mxu0
        // Predicated region
        $region33: #{tdnnf_batchnorm_ld_forward.1} parent=27 // pred_check
          %p263 = pneg %p161
        $region34: #{tdnnf_batchnorm_ld_forward.1} parent=27 // pred_check_branch
          %265 = sbr.rel (%p263) target = $region36
        $region35: #{tdnnf_batchnorm_ld_forward.1} parent=27 // pred_region
          %v266 = vld [vmem:[#allocation2] sm:$0x1]
          %vm267 = vcmask 261120
          %v268 = vsel %vm267, %v254, 0.0
          %v269 = vsel %vm267, %v256, 0.0
          %v270 = vadd.f32 %v268, %v269
          %v271 = vsel %vm267, %v259, 0.0
          %v272 = vadd.f32 %v270, %v271
          %v273 = vsel %vm267, %v261, 0.0
          %v274 = vadd.f32 %v272, %v273
          %v275 = vrot.slane %v274, 4
          %v276 = vadd.f32 %v274, %v275
          %v277 = vrot.slane %v276, 2
          %v278 = vadd.f32 %v276, %v277
          %v279 = vrot.slane %v278, 1
          %v280 = vadd.f32 %v278, %v279
          %v281 = vadd.f32 %v266, %v280
          %vm282 = vcmask 253952
          %283 = vst.msk [vmem:[#allocation2] sm:$0x1] %vm282, %v281
          %v284 = vld [vmem:[#allocation3] sm:$0x1]
          %v285 = vmul.f32 %v254, %v254
          %v286 = vmul.f32 %v256, %v256
          %v287 = vmul.f32 %v259, %v259
          %v288 = vmul.f32 %v261, %v261
          %v289 = vsel %vm267, %v285, 0.0
          %v290 = vsel %vm267, %v286, 0.0
          %v291 = vadd.f32 %v289, %v290
          %v292 = vsel %vm267, %v287, 0.0
          %v293 = vadd.f32 %v291, %v292
          %v294 = vsel %vm267, %v288, 0.0
          %v295 = vadd.f32 %v293, %v294
          %v296 = vrot.slane %v295, 4
          %v297 = vadd.f32 %v295, %v296
          %v298 = vrot.slane %v297, 2
          %v299 = vadd.f32 %v297, %v298
          %v300 = vrot.slane %v299, 1
          %v301 = vadd.f32 %v299, %v300
          %v302 = vadd.f32 %v284, %v301
          %303 = vst.msk [vmem:[#allocation3] sm:$0x1] %vm282, %v302
        $region36: #{tdnnf_batchnorm_ld_forward.1} parent=27 // pred_fallthru
          _
        %p304 = scmp.eq.s32.totalorder %s20, 1
        %p305 = pnand %p304, %p162
        %p306 = pneg %p305
        // Predicated region
        $region37: #{tdnnf_batchnorm_ld_forward.1} parent=27 // pred_check
          _
        $region38: #{tdnnf_batchnorm_ld_forward.1} parent=27 // pred_check_branch
          %308 = sbr.rel (%p305) target = $region40
        $region39: #{tdnnf_batchnorm_ld_forward.1} parent=27 // pred_region
          %v309 = vld [vmem:[#allocation2] sm:$0x1]
          %v310 = vmul.f32 %v309, 0.03125
          %v311 = vld [vmem:[#allocation3] sm:$0x1]
          %v312 = vmul.f32 %v311, 0.03125
          %v313 = vmul.f32 %v310, %v310
          %v314 = vsub.f32 %v312, %v313
          %vm315 = vcmask 253952
          %316 = vst.msk [vmem:[#allocation2] sm:$0x1] %vm315, %v310
          %v317 = vmax.f32 %v314, 0.0
          %v318 = vadd.f32 %v317, 1e-05
          %v319 = vrsqrt.pop %v318
          %v320 = vmul.f32 %v319, %v318
          %v321 = vmul.f32 %v320, %v319
          %v322 = vmul.f32 0.5, %v321
          %v323 = vsub.f32 1.5, %v322
          %v324 = vmul.f32 %v319, %v323
          %vm325 = vweird.f32 %v318
          %vm326 = vweird.f32 %v319
          %vm327 = vmor %vm325, %vm326
          %v328 = vsel %vm327, %v319, %v324
          %329 = vst.msk [vmem:[#allocation3] sm:$0x1] %vm315, %v328
        $region40: #{tdnnf_batchnorm_ld_forward.1} parent=27 // pred_fallthru
          _
        // Predicated region
        $region41: #{tdnnf_batchnorm_ld_forward.1} parent=27 // pred_check
          %p330 = pneg %p304
        $region42: #{tdnnf_batchnorm_ld_forward.1} parent=27 // pred_check_branch
          %332 = sbr.rel (%p330) target = $region44
        $region43: #{tdnnf_batchnorm_ld_forward.1} parent=27 // pred_region
          %v333 = vld [vmem:[#allocation2] sm:$0x1]
          %v335 = vperm.slane %v333, 0
          %v337 = vsub.f32 %v254, %v335
          %v338 = vsub.f32 %v256, %v335
          %v339 = vsub.f32 %v259, %v335
          %v340 = vsub.f32 %v261, %v335
          %v341 = vld [vmem:[#allocation3] sm:$0x1]
          %v343 = vperm.slane %v341, 0
          %v345 = vmul.f32 %v337, %v343
          %v346 = vmul.f32 %v338, %v343
          %v347 = vmul.f32 %v339, %v343
          %v348 = vmul.f32 %v340, %v343
          %v349 = vmax.f32 %v345, 0.0
          %v350 = vmax.f32 %v346, 0.0
          %v351 = vmax.f32 %v347, 0.0
          %v352 = vmax.f32 %v348, 0.0
          %vm353 = vcmask 261120
          %354 = vst.msk [vmem:[%s151] sm:$0xff] %vm353, %v349
          %355 = vst.msk [vmem:[%s151 + $0x8] sm:$0xff] %vm353, %v350
          %356 = vst.msk [vmem:[%s151 + $0x10] sm:$0xff] %vm353, %v351
          %357 = vst.msk [vmem:[%s151 + $0x18] sm:$0xff] %vm353, %v352
        $region44: #{tdnnf_batchnorm_ld_forward.1} parent=27 // pred_fallthru
          _
        %s358 = sand.u32 %s85, 1
        %s359 = scalar_lea.sflag [#allocation5], %s358
        %s360 = sand.u32 %s85, 1
        %s361 = smul.addr %s360, 32
        %s362 = scalar_lea.vmem [#allocation4], %s361
        // Predicated region
        $region45: #{tdnnf_batchnorm_ld_forward.1} parent=27 // pred_check
          %p363 = pneg %p95
        $region46: #{tdnnf_batchnorm_ld_forward.1} parent=27 // pred_check_branch
          %365 = sbr.rel (%p363) target = $region48
        $region47: #{tdnnf_batchnorm_ld_forward.1} parent=27 // pred_region
          %s366 = smul.u32 %s20, %s21
          %s367 = smul.u32 4, %s366
          %369 = vsyncadd %s359, 0
          %s370 = smul.addr %s367, 8
          %s371 = scalar_lea.hbm %s2, %s370
          %s372 = sshll.u32 %s362, 4
          %s373 = int_to_ptr.vmem [resolvable:$true] %s372
          %s374 = sshll.u32 %s371, 4
          %s375 = int_to_ptr.hbm [resolvable:$true] %s374
          %380 = dma.vmem_to_hbm [thread:$0]  %s373, 512, %s375, %s359, 128, 128, 8
        $region48: #{tdnnf_batchnorm_ld_forward.1} parent=27 // pred_fallthru
          _
      $region28: #{tdnnf_batchnorm_ld_forward.1} parent=5 // pred_fallthru
        _
      %p381 = scmp.le.s32.totalorder 2, %s11
      // Predicated region
      $region49: #{tdnnf_batchnorm_ld_forward.1} parent=5 // pred_check
        %p382 = pneg %p381
      $region50: #{tdnnf_batchnorm_ld_forward.1} parent=5 // pred_check_branch
        %384 = sbr.rel (%p382) target = $region52
      $region51: #{tdnnf_batchnorm_ld_forward.1} parent=5 // pred_region
        %s385 = ssub.s32 %s11, 2
        // Predicated region
        $region53: #{tdnnf_batchnorm_ld_forward.1} parent=51 // pred_check
          %p386 = pneg %p101
        $region54: #{tdnnf_batchnorm_ld_forward.1} parent=51 // pred_check_branch
          %388 = sbr.rel (%p386) target = $region56
        $region55: #{tdnnf_batchnorm_ld_forward.1} parent=51 // pred_region
          %s389 = sand.u32 %s86, 1
          %s390 = scalar_lea.sflag [#allocation5], %s389
          %s391 = sand.u32 %s86, 1
          %s392 = smul.addr %s391, 32
          %s393 = scalar_lea.vmem [#allocation4], %s392
          %395 = dma.done %s390, 512
        $region56: #{tdnnf_batchnorm_ld_forward.1} parent=51 // pred_fallthru
          _
      $region52: #{tdnnf_batchnorm_ld_forward.1} parent=5 // pred_fallthru
        _
    $region6: #{tdnnf_batchnorm_ld_forward.1} parent=1 // loop_footer
      %s15 = sadd.s32 1, %s11
    $region7: #{tdnnf_batchnorm_ld_forward.1} parent=1 // loop_footer_branch
      %10 = sbr.rel target = $region3
    $region8: #{tdnnf_batchnorm_ld_forward.1} parent=1 // loop_exit
      _
    %396 = vsyncpa [#allocation5], 1
    %s397 = scalar_lea.sflag [#allocation5], 1
    %398 = vsyncpa %s397, 1

</llo_original>
